<compile_context>
chip_gen: v7x
topology: tpu7x:2x2x1
jax: 0.10.0
libtpu: 0.0.40
codegen_flags: <defaults>
</compile_context>

<pallas_src>
import functools

import jax
import jax.numpy as jnp
from jax import lax
from jax.experimental import pallas as pl
from jax.experimental.pallas import tpu as pltpu

_EPS = 1e-8
_LANE = 128


# ---------------------------------------------------------------------------
# Kernels
# ---------------------------------------------------------------------------
def _pixelnorm_kernel(x_ref, o_ref, *, narrow_scale):
    """Single-pass kernel. x_ref/o_ref: (B, S, 128); reduce over axis 0."""
    x = x_ref[...]
    xf = x.astype(jnp.float32)
    ms = jnp.mean(xf * xf, axis=0, keepdims=True)        # (1, S, 128), f32
    inv = lax.rsqrt(ms + _EPS)                            # EUP rsqrt (free slot)
    if narrow_scale:
        # bf16/f16 on bf16-capable VPUs: scale in the narrow dtype to avoid a
        # second full-block f32 temporary (kernel is HBM-bound anyway).
        o_ref[...] = (x * inv.astype(x.dtype)).astype(o_ref.dtype)
    else:
        o_ref[...] = (xf * inv).astype(o_ref.dtype)


def _sumsq_kernel(x_ref, inv_ref, *, b_total, b_tile):
    """Two-pass, pass 1: accumulate sum of squares over batch tiles, finalize
    as rsqrt(mean + eps). x_ref: (b_tile, S, 128); inv_ref: (1, S, 128) f32."""
    k = pl.program_id(1)                                  # batch-tile axis (last)

    @pl.when(k == 0)
    def _():
        inv_ref[...] = jnp.zeros_like(inv_ref)

    xf = x_ref[...].astype(jnp.float32)
    # Mask rows past the true batch size in the (possibly partial) last block.
    row = lax.broadcasted_iota(jnp.int32, xf.shape, 0)
    xf = jnp.where(k * b_tile + row < b_total, xf, 0.0)
    inv_ref[...] += jnp.sum(xf * xf, axis=0, keepdims=True)

    @pl.when(k == pl.num_programs(1) - 1)
    def _():
        inv_ref[...] = lax.rsqrt(inv_ref[...] * (1.0 / b_total) + _EPS)


def _apply_kernel(x_ref, inv_ref, o_ref, *, narrow_scale):
    """Two-pass, pass 2: elementwise normalize with precomputed inv stats."""
    x = x_ref[...]
    inv = inv_ref[...]
    if narrow_scale:
        o_ref[...] = (x * inv.astype(x.dtype)).astype(o_ref.dtype)
    else:
        o_ref[...] = (x.astype(jnp.float32) * inv).astype(o_ref.dtype)


# ---------------------------------------------------------------------------
# Tile / budget selection
# ---------------------------------------------------------------------------
def _sublane_multiple(dtype):
    # f32 -> 8, bf16/f16 -> 16, int8/fp8 -> 32 (packed-sublane tiling granule).
    return max(8, 32 // jnp.dtype(dtype).itemsize)


def _device_kind():
    try:
        return jax.devices()[0].device_kind.lower()
    except Exception:
        return ""


def _vmem_budget_bytes(kind):
    if "v7" in kind or "tpu7" in kind or "tpu 7" in kind:
        return 24 << 20     # v7x: 64 MiB VMEM per TC -> leave headroom
    if "v6" in kind:
        return 48 << 20     # v6e: 128 MiB VMEM
    if "v5" in kind:
        return 12 << 20     # v5e: 16 MiB default scoped VMEM
    return 12 << 20         # unknown: conservative


def _choose_chunk_tile(b, n_chunks, itemsize, sub, budget, min_steps=8):
    """Largest chunk tile (multiple of `sub`) fitting VMEM, capped so the grid
    has >= min_steps steps (pipelining + megacore sharding)."""
    # live bytes per chunk-column of a block:
    #   2x input + 2x output (double-buffered) + ~2 block-sized f32 temporaries
    per_chunk = b * _LANE * (4 * itemsize + 8)
    by_vmem = (budget // per_chunk) // sub * sub
    by_steps = pl.cdiv(n_chunks, min_steps) // sub * sub
    tile = max(sub, min(by_vmem, by_steps))
    # A block equal to the full dim is always legal regardless of divisibility.
    return n_chunks if tile >= n_chunks else tile


def _pick_b_tile(b, per_row_bytes, budget):
    bt = budget // max(per_row_bytes, 1)
    bt = max(8, (bt // 8) * 8)
    return min(b, bt)


# ---------------------------------------------------------------------------
# pallas_call wrappers
# ---------------------------------------------------------------------------
def _single_pass(x3, *, tile, narrow_scale, vmem_limit):
    b, n_chunks, lane = x3.shape
    grid = (pl.cdiv(n_chunks, tile),)
    return pl.pallas_call(
        functools.partial(_pixelnorm_kernel, narrow_scale=narrow_scale),
        out_shape=jax.ShapeDtypeStruct(x3.shape, x3.dtype),
        grid=grid,
        in_specs=[pl.BlockSpec((b, tile, lane), lambda i: (0, i, 0))],
        out_specs=pl.BlockSpec((b, tile, lane), lambda i: (0, i, 0)),
        compiler_params=pltpu.CompilerParams(
            dimension_semantics=("parallel",),     # megacore sharding on v7x
            vmem_limit_bytes=vmem_limit,
        ),
    )(x3)


def _two_pass(x3, *, sub, budget, vmem_limit, narrow_scale):
    """Large-B fallback: tiled sum-of-squares, then elementwise normalize."""
    b, n_chunks, lane = x3.shape
    itemsize = x3.dtype.itemsize
    s1 = n_chunks if n_chunks <= 2 * sub else 2 * sub

    # Pass 1: per-column rsqrt(mean-of-squares) stats, batch axis reduced.
    per_row_p1 = s1 * lane * (2 * itemsize + 8)
    b_tile1 = _pick_b_tile(b, per_row_p1, budget)
    grid1 = (pl.cdiv(n_chunks, s1), pl.cdiv(b, b_tile1))
    inv = pl.pallas_call(
        functools.partial(_sumsq_kernel, b_total=b, b_tile=b_tile1),
        out_shape=jax.ShapeDtypeStruct((1, n_chunks, lane), jnp.float32),
        grid=grid1,
        in_specs=[pl.BlockSpec((b_tile1, s1, lane), lambda j, k: (k, j, 0))],
        out_specs=pl.BlockSpec((1, s1, lane), lambda j, k: (0, j, 0)),
        compiler_params=pltpu.CompilerParams(
            dimension_semantics=("parallel", "arbitrary"),
            vmem_limit_bytes=vmem_limit,
        ),
    )(x3)

    # Pass 2: elementwise normalize.
    per_row_p2 = s1 * lane * (4 * itemsize + 8)
    b_tile2 = _pick_b_tile(b, per_row_p2, budget)
    grid2 = (pl.cdiv(b, b_tile2), pl.cdiv(n_chunks, s1))
    return pl.pallas_call(
        functools.partial(_apply_kernel, narrow_scale=narrow_scale),
        out_shape=jax.ShapeDtypeStruct(x3.shape, x3.dtype),
        grid=grid2,
        in_specs=[pl.BlockSpec((b_tile2, s1, lane), lambda i, j: (i, j, 0)),
                  pl.BlockSpec((1, s1, lane), lambda i, j: (0, j, 0))],
        out_specs=pl.BlockSpec((b_tile2, s1, lane), lambda i, j: (i, j, 0)),
        compiler_params=pltpu.CompilerParams(
            dimension_semantics=("parallel", "parallel"),
            vmem_limit_bytes=vmem_limit,
        ),
    )(x3, inv)


def pixel_norm(x, *, force_two_pass=False):
    """PixelNorm forward. `x`: any shape; normalization is over dim 0."""
    orig_shape = x.shape
    b = int(orig_shape[0])
    n = 1
    for d in orig_shape[1:]:
        n *= int(d)
    if b == 0 or n == 0:
        return x

    # Lane-packed view: (B, n_chunks, 128). Zero-pad the flattened trailing
    # dim to a multiple of 128 so no block ever reads uninitialized lanes.
    n_chunks = pl.cdiv(n, _LANE)
    n_pad = n_chunks * _LANE
    x2 = x.reshape(b, n)
    if n_pad != n:
        x2 = jnp.pad(x2, ((0, 0), (0, n_pad - n)))
    x3 = x2.reshape(b, n_chunks, _LANE)

    itemsize = x3.dtype.itemsize
    sub = _sublane_multiple(x3.dtype)
    kind = _device_kind()
    budget = _vmem_budget_bytes(kind)
    vmem_limit = budget + (8 << 20)
    # Narrow-dtype final scale only where the VPU supports it (not v5-gen).
    narrow_scale = (itemsize == 2) and ("v5" not in kind)

    # If even the minimum-width block (sub chunks, full B) blows the budget,
    # fall back to the two-pass scheme (3x HBM traffic but lane-dense tiles).
    per_chunk_live = b * _LANE * (4 * itemsize + 8)
    if force_two_pass or per_chunk_live * sub > budget:
        out3 = _two_pass(x3, sub=sub, budget=budget, vmem_limit=vmem_limit,
                         narrow_scale=narrow_scale)
    else:
        tile = _choose_chunk_tile(b, n_chunks, itemsize, sub, budget)
        out3 = _single_pass(x3, tile=tile, narrow_scale=narrow_scale,
                            vmem_limit=vmem_limit)

    out = out3.reshape(b, n_pad)
    if n_pad != n:
        out = out[:, :n]
    return out.reshape(orig_shape)


# ---------------------------------------------------------------------------
def _reference(x):
    return x / jnp.sqrt(jnp.mean(x * x, axis=0, keepdims=True) + _EPS)


if __name__ == "__main__":
    key = jax.random.PRNGKey(0)
    k1, k2, k3 = jax.random.split(key, 3)

    # 1) Shape implied by the module (B, C, H, W), small.
    x = jax.random.normal(k1, (2, 4, 16, 16), jnp.float32)
    out = jax.block_until_ready(pixel_norm(x))
    ref = _reference(x)
    assert out.shape == x.shape, out.shape
    assert bool(jnp.all(jnp.isfinite(out)))
    assert bool(jnp.allclose(out, ref, rtol=1e-5, atol=1e-5))

    # 2) Larger N -> multi-step pipelined grid path.
    y = jax.random.normal(k2, (4, 8, 32, 32), jnp.float32)
    out_y = jax.block_until_ready(pixel_norm(y))
    assert bool(jnp.allclose(out_y, _reference(y), rtol=1e-5, atol=1e-5))

    # 3) Non-multiple-of-128 trailing size (wrapper zero-pads the lane dim).
    z = jax.random.normal(k3, (3, 5, 7, 9), jnp.float32)   # N = 315
    out_z = jax.block_until_ready(pixel_norm(z))
    assert bool(jnp.allclose(out_z, _reference(z), rtol=1e-5, atol=1e-5))

    # 4) Large-B fallback (two-pass) path, forced on a small input.
    out_tp = jax.block_until_ready(pixel_norm(y, force_two_pass=True))
    assert bool(jnp.allclose(out_tp, _reference(y), rtol=1e-5, atol=1e-5))

    # 5) bf16 input: stats stay f32, final scale in bf16 where supported.
    xb = x.astype(jnp.bfloat16)
    out_b = jax.block_until_ready(pixel_norm(xb))
    ref_b = _reference(xb.astype(jnp.float32))
    assert out_b.dtype == jnp.bfloat16
    assert bool(jnp.allclose(out_b.astype(jnp.float32), ref_b, rtol=3e-2, atol=3e-2))

    print("KERNEL_OK")
</pallas_src>

<mosaic_0001>
module attributes {stable_mosaic.version = 11 : i64} {
  func.func @_pixelnorm_kernel(%arg0: i32, %arg1: memref<2x8x128xf32, #tpu.memory_space<vmem>>, %arg2: memref<2x8x128xf32, #tpu.memory_space<vmem>>) attributes {dimension_semantics = [#tpu.dimension_semantics<parallel>], iteration_bounds = array<i64: 1>, scalar_prefetch = 0 : i64, scratch_operands = 0 : i64, tpu.core_type = #tpu.core_type<tc>, window_params = [{transform_indices = @transform_0, window_bounds = array<i64: 2, 8, 128>}, {transform_indices = @transform_1, window_bounds = array<i64: 2, 8, 128>}]} {
    %c0 = arith.constant 0 : index
    %c0_0 = arith.constant 0 : index
    %c0_1 = arith.constant 0 : index
    %0 = vector.load %arg1[%c0, %c0_0, %c0_1] : memref<2x8x128xf32, #tpu.memory_space<vmem>>, vector<2x8x128xf32>
    %1 = arith.mulf %0, %0 : vector<2x8x128xf32>
    %cst = arith.constant dense<0.000000e+00> : vector<8x128xf32>
    %2 = vector.multi_reduction <add>, %1, %cst [0] : vector<2x8x128xf32> to vector<8x128xf32>
    %3 = vector.shape_cast %2 : vector<8x128xf32> to vector<1x8x128xf32>
    %cst_2 = arith.constant 2.000000e+00 : f32
    %4 = vector.broadcast %cst_2 : f32 to vector<1x8x128xf32>
    %5 = arith.divf %3, %4 : vector<1x8x128xf32>
    %cst_3 = arith.constant 9.99999993E-9 : f32
    %6 = vector.broadcast %cst_3 : f32 to vector<1x8x128xf32>
    %7 = arith.addf %5, %6 : vector<1x8x128xf32>
    %8 = math.rsqrt %7 : vector<1x8x128xf32>
    %9 = vector.broadcast %8 : vector<1x8x128xf32> to vector<2x8x128xf32>
    %10 = arith.mulf %0, %9 : vector<2x8x128xf32>
    %c0_4 = arith.constant 0 : index
    %c0_5 = arith.constant 0 : index
    %c0_6 = arith.constant 0 : index
    %11 = vector.load %arg2[%c0_4, %c0_5, %c0_6] : memref<2x8x128xf32, #tpu.memory_space<vmem>>, vector<2x8x128xf32>
    tpu.vector_store %arg2[%c0_4, %c0_5, %c0_6], %10 {strides = array<i32>} : memref<2x8x128xf32, #tpu.memory_space<vmem>>, vector<2x8x128xf32>,
    return
  }
  func.func @transform_0(%arg0: i32) -> (i32, i32, i32) {
    %c0_i32 = arith.constant 0 : i32
    %c0_i32_0 = arith.constant 0 : i32
    %c0_i32_1 = arith.constant 0 : i32
    return %c0_i32, %arg0, %c0_i32_0 : i32, i32, i32
  }
  func.func @transform_1(%arg0: i32) -> (i32, i32, i32) {
    %c0_i32 = arith.constant 0 : i32
    %c0_i32_0 = arith.constant 0 : i32
    %c0_i32_1 = arith.constant 0 : i32
    return %c0_i32, %arg0, %c0_i32_0 : i32, i32, i32
  }
}

</mosaic_0001>

<llo_original>
// kernel: tpu_custom_call.1
$region0: #{tpu_custom_call.1}
  #allocation0 [shape = 'u32[]', space=smem, size = 0x4, offset = 0x4, fixed_abs, tag = 'smem constant byte address 0x4 - core index']
  #allocation1 [shape = 'u32[144,128]{1,0:T(1,128)}', space=vmem, size = 0x12000, scoped, tag = 'internal scratch']
  %s0 = inlined_call_operand.hbm [shape: f32[2,8,128], index: 0, kind: input, shape index: {}]
  %s1 = inlined_call_operand.hbm [shape: f32[2,8,128], index: 1, kind: output, shape index: {}]
  %s2 = sld [smem:[#allocation0]]
  $region18: #{tpu_custom_call.1} parent=0
    _
  %s4 = ssub.s32 1, %s2
  %s5 = scalar_select 0, %s4, %s2
  $region1: #{tpu_custom_call.1} parent=0
    #allocation2 [shape = 'u8[8192]{0}', space=vmem, size = 0x2000, scoped, tag = 'input window, operand 0, single buffered']
    #allocation3 [shape = 's32[1]{0}', space=sflag, size = 0x4, scoped, tag = 'scoped memory for tpu_custom_call.1']
    #allocation4 [shape = 's32[1]{0}', space=sflag, size = 0x4, scoped, tag = 'scoped memory for tpu_custom_call.1']
    #allocation5 [shape = 'u8[8192]{0}', space=vmem, size = 0x2000, scoped, tag = 'output window, operand 0, single buffered']
    %6 = vsyncpa [#allocation3], 0
    %7 = vsyncpa [#allocation4], 0
    // Predicated region
    $region2: #{tpu_custom_call.1} parent=1 // pred_check
      _
    $region3: #{tpu_custom_call.1} parent=1 // pred_check_branch
      %9 = sbr.rel (0) target = $region5
    $region4: #{tpu_custom_call.1} parent=1 // pred_region
      %s11 = ssub.s32 256, 256
      %12 = vsyncadd [#allocation3], %s11
      %s13 = sshll.u32 [#allocation2], 4
      %s14 = int_to_ptr.vmem [resolvable:$true] %s13
      %19 = dma.hbm_to_vmem [thread:$0]  %s0, 256, %s14, [#allocation3], 128, 128, 8
    $region5: #{tpu_custom_call.1} parent=1 // pred_fallthru
      _
    // Predicated region
    $region6: #{tpu_custom_call.1} parent=1 // pred_check
      _
    $region7: #{tpu_custom_call.1} parent=1 // pred_check_branch
      %21 = sbr.rel (0) target = $region9
    $region8: #{tpu_custom_call.1} parent=1 // pred_region
      %22 = dma.done [#allocation3], 256
    $region9: #{tpu_custom_call.1} parent=1 // pred_fallthru
      _
    %v23 = vld [vmem:[#allocation2] sm:$0xff]
    %v24 = vld [vmem:[#allocation2 + $0x8] sm:$0xff]
    %v25 = vmul.f32 %v23, %v23
    %v26 = vmul.f32 %v24, %v24
    %v27 = vadd.f32 %v25, %v26
    %v28 = vrcp.pop 2.0
    %v29 = vmul.f32 %v27, %v28
    %v30 = vadd.f32 %v29, 1e-08
    %v31 = vrsqrt.pop %v30
    %v32 = vmul.f32 %v23, %v31
    %v33 = vmul.f32 %v24, %v31
    %34 = vst [vmem:[#allocation5] sm:$0xff] %v32
    %35 = vst [vmem:[#allocation5 + $0x8] sm:$0xff] %v33
    // Predicated region
    $region10: #{tpu_custom_call.1} parent=1 // pred_check
      _
    $region11: #{tpu_custom_call.1} parent=1 // pred_check_branch
      %37 = sbr.rel (0) target = $region13
    $region12: #{tpu_custom_call.1} parent=1 // pred_region
      %s39 = ssub.s32 256, 256
      %40 = vsyncadd [#allocation4], %s39
      %s41 = sshll.u32 [#allocation5], 4
      %s42 = int_to_ptr.vmem [resolvable:$true] %s41
      %47 = dma.vmem_to_hbm [thread:$0]  %s42, 256, %s1, [#allocation4], 128, 128, 8
    $region13: #{tpu_custom_call.1} parent=1 // pred_fallthru
      _
    // Predicated region
    $region14: #{tpu_custom_call.1} parent=1 // pred_check
      _
    $region15: #{tpu_custom_call.1} parent=1 // pred_check_branch
      %49 = sbr.rel (0) target = $region17
    $region16: #{tpu_custom_call.1} parent=1 // pred_region
      %50 = dma.done [#allocation4], 256
    $region17: #{tpu_custom_call.1} parent=1 // pred_fallthru
      _
    %51 = vsyncpa [#allocation3], 1
    %52 = vsyncpa [#allocation4], 1

</llo_original>
